<compile_context>
chip_gen: v7x
topology: tpu7x:2x2x1
jax: 0.10.0
libtpu: 0.0.40
codegen_flags: <defaults>
</compile_context>

<pallas_src>
import jax
import jax.numpy as jnp
from jax.experimental import pallas as pl
from jax.experimental.pallas import tpu as pltpu


def linear_kernel(x_ref, wb_ref, o_ref):
    # x_ref:  (IN=2, TB) VMEM tile   (B on the 128-lane axis -> lane-dense)
    # wb_ref: (3,)       SMEM        [w0, w1, b] scalars
    # o_ref:  (OUT=1, TB) VMEM tile  (lane-dense output -> unmasked stores)
    x0 = x_ref[0:1, :]              # (1, TB)
    x1 = x_ref[1:2, :]              # (1, TB)
    w0 = wb_ref[0]
    w1 = wb_ref[1]
    b = wb_ref[2]
    y = x0 * w0 + x1 * w1 + b       # pure VPU: 2 muls + 2 adds, no MXU
    o_ref[...] = y.astype(o_ref.dtype)


def linear_forward_feature_major(x_t, weight, bias, *, tb=8192):
    """Kernel-native, transpose-free path.

    x_t:    (IN=2, B)  feature-major input
    weight: (OUT=1, IN=2)  nn.Linear layout
    bias:   (OUT=1,)
    returns (OUT=1, B)  ==  weight @ x_t + bias[:, None]
    """
    IN, B = x_t.shape
    OUT, IN_w = weight.shape
    assert IN == 2 and IN_w == 2 and OUT == 1, "specialized for Linear(2, 1)"

    # Lane-dense tiling over B: tile must be a multiple of 128; pad B up so the
    # grid covers it exactly (padding only materializes when actually needed).
    b_pad = ((B + 127) // 128) * 128
    tb = min(tb, b_pad)
    b_pad = ((b_pad + tb - 1) // tb) * tb
    if b_pad != B:
        x_t = jnp.pad(x_t, ((0, 0), (0, b_pad - B)))

    # Single (3,) SMEM stream: [w0, w1, b].
    wb = jnp.concatenate([weight.reshape(OUT * IN), bias]).astype(jnp.float32)

    y_t = pl.pallas_call(
        linear_kernel,
        out_shape=jax.ShapeDtypeStruct((OUT, b_pad), x_t.dtype),
        grid=(b_pad // tb,),
        in_specs=[
            pl.BlockSpec((IN, tb), lambda i: (0, i)),               # x tile
            pl.BlockSpec(memory_space=pltpu.MemorySpace.SMEM),      # [w0,w1,b]
        ],
        out_specs=pl.BlockSpec((OUT, tb), lambda i: (0, i)),
        compiler_params=pltpu.CompilerParams(
            dimension_semantics=("parallel",)),                     # v7x 2-TC
    )(x_t, wb)

    if b_pad != B:
        y_t = y_t[:, :B]
    return y_t


def linear_forward(x, weight, bias, *, tb=8192):
    """PyTorch nn.Linear(2, 1) semantics: x (B, 2) -> y (B, 1) = x @ W.T + b."""
    B, IN = x.shape
    OUT = weight.shape[0]
    # TODO(synk): fold this transpose into the producer of x (keep x
    # feature-major at the graph level); standalone it is one extra HBM pass.
    x_t = x.T                                            # (IN, B)
    y_t = linear_forward_feature_major(x_t, weight, bias, tb=tb)   # (1, B)
    # (1, B) -> (B, 1) is a pure layout no-op (reshape), not a transpose pass.
    return y_t.reshape(B, OUT)


if __name__ == "__main__":
    key = jax.random.PRNGKey(0)
    kx, kw, kb = jax.random.split(key, 3)

    B, IN, OUT = 256, 2, 1

    # Deterministic synthetic parameters matching nn.Linear(2, 1).
    weight = jax.random.normal(kw, (OUT, IN), dtype=jnp.float32) * 0.5
    bias = jax.random.normal(kb, (OUT,), dtype=jnp.float32) * 0.1

    # ---- Kernel-native feature-major path (no transposes anywhere) ----
    x_t = jax.random.normal(kx, (IN, B), dtype=jnp.float32)       # (2, B)
    y_t = jax.block_until_ready(linear_forward_feature_major(x_t, weight, bias))
    ref_t = weight @ x_t + bias[:, None]
    assert y_t.shape == (OUT, B)
    assert jnp.allclose(y_t, ref_t, atol=1e-5, rtol=1e-5)

    # ---- PyTorch-layout wrapper (module semantics) ----
    x = x_t.T                                                     # (B, 2)
    y = jax.block_until_ready(linear_forward(x, weight, bias))
    y_ref = x @ weight.T + bias
    assert y.shape == (B, OUT)
    assert jnp.allclose(y, y_ref, atol=1e-5, rtol=1e-5)

    # ---- Batch not a multiple of 128 (exercises pad + slice path) ----
    B2 = 200
    x2 = jax.random.normal(jax.random.PRNGKey(1), (B2, IN), dtype=jnp.float32)
    y2 = jax.block_until_ready(linear_forward(x2, weight, bias))
    assert jnp.allclose(y2, x2 @ weight.T + bias, atol=1e-5, rtol=1e-5)

    print("KERNEL_OK")
</pallas_src>

<mosaic_0001>
module attributes {stable_mosaic.version = 11 : i64} {
  func.func @linear_kernel(%arg0: i32, %arg1: memref<2x256xf32, #tpu.memory_space<vmem>>, %arg2: memref<3xf32, #tpu.memory_space<smem>>, %arg3: memref<1x256xf32, #tpu.memory_space<vmem>>) attributes {dimension_semantics = [#tpu.dimension_semantics<parallel>], iteration_bounds = array<i64: 1>, scalar_prefetch = 0 : i64, scratch_operands = 0 : i64, tpu.core_type = #tpu.core_type<tc>, window_params = [{transform_indices = @transform_0, window_bounds = array<i64: 2, 256>}, {transform_indices = @transform_1, window_bounds = array<i64: 3>}, {transform_indices = @transform_2, window_bounds = array<i64: 1, 256>}]} {
    %c0 = arith.constant 0 : index
    %c0_0 = arith.constant 0 : index
    %0 = vector.load %arg1[%c0, %c0_0] : memref<2x256xf32, #tpu.memory_space<vmem>>, vector<1x256xf32>
    %c1 = arith.constant 1 : index
    %c0_1 = arith.constant 0 : index
    %1 = vector.load %arg1[%c1, %c0_1] : memref<2x256xf32, #tpu.memory_space<vmem>>, vector<1x256xf32>
    %c0_2 = arith.constant 0 : index
    %2 = memref.load %arg2[%c0_2] : memref<3xf32, #tpu.memory_space<smem>>
    %c1_3 = arith.constant 1 : index
    %3 = memref.load %arg2[%c1_3] : memref<3xf32, #tpu.memory_space<smem>>
    %c2 = arith.constant 2 : index
    %4 = memref.load %arg2[%c2] : memref<3xf32, #tpu.memory_space<smem>>
    %5 = vector.broadcast %2 : f32 to vector<1x256xf32>
    %6 = arith.mulf %0, %5 : vector<1x256xf32>
    %7 = vector.broadcast %3 : f32 to vector<1x256xf32>
    %8 = arith.mulf %1, %7 : vector<1x256xf32>
    %9 = arith.addf %6, %8 : vector<1x256xf32>
    %10 = vector.broadcast %4 : f32 to vector<1x256xf32>
    %11 = arith.addf %9, %10 : vector<1x256xf32>
    %c0_4 = arith.constant 0 : index
    %c0_5 = arith.constant 0 : index
    %12 = vector.load %arg3[%c0_4, %c0_5] : memref<1x256xf32, #tpu.memory_space<vmem>>, vector<1x256xf32>
    tpu.vector_store %arg3[%c0_4, %c0_5], %11 {strides = array<i32>} : memref<1x256xf32, #tpu.memory_space<vmem>>, vector<1x256xf32>,
    return
  }
  func.func @transform_0(%arg0: i32) -> (i32, i32) {
    %c0_i32 = arith.constant 0 : i32
    %c0_i32_0 = arith.constant 0 : i32
    return %c0_i32, %arg0 : i32, i32
  }
  func.func @transform_1(%arg0: i32) -> i32 {
    %c0_i32 = arith.constant 0 : i32
    %c0_i32_0 = arith.constant 0 : i32
    return %c0_i32 : i32
  }
  func.func @transform_2(%arg0: i32) -> (i32, i32) {
    %c0_i32 = arith.constant 0 : i32
    %c0_i32_0 = arith.constant 0 : i32
    return %c0_i32, %arg0 : i32, i32
  }
}

</mosaic_0001>

<llo_original>
// kernel: tpu_custom_call.1
$region0: #{tpu_custom_call.1}
  #allocation0 [shape = 'u32[]', space=smem, size = 0x4, offset = 0x4, fixed_abs, tag = 'smem constant byte address 0x4 - core index']
  #allocation1 [shape = 'u32[144,128]{1,0:T(1,128)}', space=vmem, size = 0x12000, scoped, tag = 'internal scratch']
  %s0 = inlined_call_operand.hbm [shape: f32[2,256], index: 0, kind: input, shape index: {}]
  %s1 = inlined_call_operand.vmem [shape: f32[3], index: 1, kind: input, shape index: {}]
  %s2 = inlined_call_operand.hbm [shape: f32[1,256], index: 2, kind: output, shape index: {}]
  %s3 = sld [smem:[#allocation0]]
  $region26: #{tpu_custom_call.1} parent=0
    _
  %s5 = ssub.s32 1, %s3
  %s6 = scalar_select 0, %s5, %s3
  $region1: #{tpu_custom_call.1} parent=0
    #allocation2 [shape = 'u8[2048]{0}', space=vmem, size = 0x800, scoped, tag = 'input window, operand 0, single buffered']
    #allocation3 [shape = 's32[1]{0}', space=sflag, size = 0x4, scoped, tag = 'scoped memory for tpu_custom_call.1']
    #allocation4 [shape = 's32[1]{0}', space=sflag, size = 0x4, scoped, tag = 'scoped memory for tpu_custom_call.1']
    #allocation5 [shape = 's32[1]{0}', space=sflag, size = 0x4, scoped, tag = 'scoped memory for tpu_custom_call.1']
    #allocation6 [shape = 'u8[512]{0}', space=smem, size = 0x200, scoped, tag = 'input window, operand 1, single buffered']
    #allocation7 [shape = 'u8[1024]{0}', space=vmem, size = 0x400, scoped, tag = 'output window, operand 0, single buffered']
    %7 = vsyncpa [#allocation3], 0
    %8 = vsyncpa [#allocation5], 0
    %9 = vsyncpa [#allocation4], 0
    // Predicated region
    $region2: #{tpu_custom_call.1} parent=1 // pred_check
      _
    $region3: #{tpu_custom_call.1} parent=1 // pred_check_branch
      %11 = sbr.rel (0) target = $region5
    $region4: #{tpu_custom_call.1} parent=1 // pred_region
      %s13 = ssub.s32 64, 64
      %14 = vsyncadd [#allocation3], %s13
      %s16 = sshll.u32 [#allocation2], 4
      %s17 = int_to_ptr.vmem [resolvable:$true] %s16
      %19 = dma.hbm_to_vmem [thread:$0]  %s0, 64, %s17, [#allocation3]
    $region5: #{tpu_custom_call.1} parent=1 // pred_fallthru
      _
    // Predicated region
    $region6: #{tpu_custom_call.1} parent=1 // pred_check
      _
    $region7: #{tpu_custom_call.1} parent=1 // pred_check_branch
      %21 = sbr.rel (0) target = $region9
    $region8: #{tpu_custom_call.1} parent=1 // pred_region
      %s23 = ssub.s32 16, 16
      %24 = vsyncadd [#allocation5], %s23
      %s26 = sshll.u32 %s1, 4
      %s27 = int_to_ptr.vmem [resolvable:$true] %s26
      %29 = dma.vmem_to_smem %s27, 16, [#allocation6], [#allocation5]
    $region9: #{tpu_custom_call.1} parent=1 // pred_fallthru
      _
    // Predicated region
    $region10: #{tpu_custom_call.1} parent=1 // pred_check
      _
    $region11: #{tpu_custom_call.1} parent=1 // pred_check_branch
      %31 = sbr.rel (0) target = $region13
    $region12: #{tpu_custom_call.1} parent=1 // pred_region
      %32 = dma.done [#allocation3], 64
    $region13: #{tpu_custom_call.1} parent=1 // pred_fallthru
      _
    // Predicated region
    $region14: #{tpu_custom_call.1} parent=1 // pred_check
      _
    $region15: #{tpu_custom_call.1} parent=1 // pred_check_branch
      %34 = sbr.rel (0) target = $region17
    $region16: #{tpu_custom_call.1} parent=1 // pred_region
      %35 = dma.done [#allocation5], 16
    $region17: #{tpu_custom_call.1} parent=1 // pred_fallthru
      _
    %36 = sfence
    %v37 = vld [vmem:[#allocation2] ss:$2 sm:$0x3]
    %s38 = scalar_lea.vmem [#allocation2], 1
    %v39 = vld [vmem:[%s38] ss:$2 sm:$0x3]
    %s40 = sld [smem:[#allocation6]]
    %s41 = sld [smem:[#allocation6 + $0x1]]
    %s42 = sld [smem:[#allocation6 + $0x2]]
    %v43 = vstv %s40
    %v44 = vmul.f32 %v37, %v43
    %v45 = vstv %s41
    %v46 = vmul.f32 %v39, %v45
    %v47 = vadd.f32 %v44, %v46
    %v48 = vstv %s42
    %v49 = vadd.f32 %v47, %v48
    %v50 = vlaneseq
    %vm51 = vcmp.ge.s32.totalorder %v50, 0
    %vm52 = vcmp.lt.s32.totalorder %v50, 256
    %vm53 = vmand %vm51, %vm52
    %54 = vst.msk [vmem:[#allocation7] sm:$0x3] %vm53, %v49
    // Predicated region
    $region18: #{tpu_custom_call.1} parent=1 // pred_check
      _
    $region19: #{tpu_custom_call.1} parent=1 // pred_check_branch
      %56 = sbr.rel (0) target = $region21
    $region20: #{tpu_custom_call.1} parent=1 // pred_region
      %s58 = ssub.s32 32, 32
      %59 = vsyncadd [#allocation4], %s58
      %s61 = sshll.u32 [#allocation7], 4
      %s62 = int_to_ptr.vmem [resolvable:$true] %s61
      %64 = dma.vmem_to_hbm [thread:$0]  %s62, 32, %s2, [#allocation4]
    $region21: #{tpu_custom_call.1} parent=1 // pred_fallthru
      _
    // Predicated region
    $region22: #{tpu_custom_call.1} parent=1 // pred_check
      _
    $region23: #{tpu_custom_call.1} parent=1 // pred_check_branch
      %66 = sbr.rel (0) target = $region25
    $region24: #{tpu_custom_call.1} parent=1 // pred_region
      %67 = dma.done [#allocation4], 32
    $region25: #{tpu_custom_call.1} parent=1 // pred_fallthru
      _
    %68 = vsyncpa [#allocation3], 1
    %69 = vsyncpa [#allocation4], 1
    %70 = vsyncpa [#allocation5], 1

</llo_original>
